<compile_context>
chip_gen: v7x
topology: tpu7x:2x2x1
jax: 0.10.0
libtpu: 0.0.40
codegen_flags: <defaults>
</compile_context>

<pallas_src>
import functools

import jax
import jax.numpy as jnp
from jax import lax
from jax.experimental import pallas as pl
from jax.experimental.pallas import tpu as pltpu


def _round_up(n, m):
    return ((n + m - 1) // m) * m


def _critic_kernel(h_ref, w1_ref, w2_ref, w3_ref, bwq_ref, b4_ref, o_ref,
                   *, compute_dtype):
    cd = compute_dtype
    b1 = bwq_ref[0:1, :]          # (1, H) f32
    b2 = bwq_ref[1:2, :]
    b3 = bwq_ref[2:3, :]
    w4 = bwq_ref[3:4, :]          # q_out weight as a row, f32

    # fc1: one K=(obs+goal+act) matmul (action scale already folded into w1).
    h = jnp.dot(h_ref[...], w1_ref[...], preferred_element_type=jnp.float32)
    h = jnp.maximum(h + b1, 0.0)

    # fc2
    h = jnp.dot(h.astype(cd), w2_ref[...], preferred_element_type=jnp.float32)
    h = jnp.maximum(h + b2, 0.0)

    # fc3
    h = jnp.dot(h.astype(cd), w3_ref[...], preferred_element_type=jnp.float32)
    h = jnp.maximum(h + b3, 0.0)

    # q_out (out_features = 1): contract w4 (1,H) with h (tile_b,H) along the
    # hidden axis -> (1, tile_b), lane-dense along the batch, unmasked store.
    q = lax.dot_general(w4, h, dimension_numbers=(((1,), (1,)), ((), ())),
                        preferred_element_type=jnp.float32)
    o_ref[...] = q + b4_ref[0]    # scalar bias read from SMEM


def critic_forward(x, actions, goals, params, *, max_action,
                   tile_b=2048, compute_dtype=jnp.bfloat16):
    """Pallas-backed forward pass of the critic.  Returns (B, 1) f32."""
    x = x.astype(jnp.float32)
    goals = goals.astype(jnp.float32)
    actions = actions.astype(jnp.float32)

    B, obs_dim = x.shape
    goal_dim = goals.shape[1]
    act_dim = actions.shape[1]
    in_dim = obs_dim + goal_dim + act_dim

    w1, b1, w2, b2, w3, b3, w4, b4 = params
    hidden = w1.shape[1]

    cd = jnp.dtype(compute_dtype)

    # Fold the action scaling into fc1's weight rows (one-time transform).
    act_start = obs_dim + goal_dim
    w1s = w1.at[act_start:].multiply(jnp.float32(1.0 / max_action))

    if cd != jnp.float32:
        # bf16 MXU operands, f32 accumulation, f32 bias/ReLU epilogue.
        w1s, w2, w3 = (w.astype(cd) for w in (w1s, w2, w3))

    # Stack b1/b2/b3 and the q_out weight row into one small VMEM operand.
    bwq = jnp.concatenate([b1.reshape(1, hidden), b2.reshape(1, hidden),
                           b3.reshape(1, hidden), w4.reshape(1, hidden)],
                          axis=0).astype(jnp.float32)          # (4, H)
    b4_s = b4.reshape(1).astype(jnp.float32)                   # scalar -> SMEM

    # Single concatenated activation array (cat never needs to be recomputed
    # per-step; scale already lives in w1s).  Stored in compute dtype.
    h_in = jnp.concatenate([x, goals, actions], axis=1).astype(cd)

    # Batch tiling.  Small B -> one 8-aligned tile.  B > 256 -> at least two
    # 128-aligned tiles (megacore split on v7x), capped at tile_b.
    tile_cap = max(128, (int(tile_b) // 128) * 128)
    if B <= 256:
        tile = _round_up(B, 8)
        b_pad = tile
    else:
        half = _round_up(-(-B // 2), 128)
        tile = min(tile_cap, half)
        b_pad = _round_up(B, tile)

    if b_pad != B:
        h_in = jnp.pad(h_in, ((0, b_pad - B), (0, 0)))

    grid = (b_pad // tile,)
    const = lambda i: (0, 0)   # weights/biases: resident blocks, DMA'd once

    kernel = functools.partial(_critic_kernel, compute_dtype=cd)

    out = pl.pallas_call(
        kernel,
        out_shape=jax.ShapeDtypeStruct((1, b_pad), jnp.float32),
        grid=grid,
        in_specs=[
            pl.BlockSpec((tile, in_dim), lambda i: (i, 0)),       # activations
            pl.BlockSpec((in_dim, hidden), const),                # w1 (scaled)
            pl.BlockSpec((hidden, hidden), const),                # w2
            pl.BlockSpec((hidden, hidden), const),                # w3
            pl.BlockSpec((4, hidden), const),                     # b1,b2,b3,w4_row
            pl.BlockSpec(memory_space=pltpu.MemorySpace.SMEM),    # b4 scalar
        ],
        out_specs=pl.BlockSpec((1, tile), lambda i: (0, i)),      # lane-dense q row
        compiler_params=pltpu.CompilerParams(
            dimension_semantics=("parallel",)),                   # megacore batch split
    )(h_in, w1s, w2, w3, bwq, b4_s)

    return out[0, :B, None]                                       # (B, 1)


def init_critic_params(key, in_dim, hidden=64):
    """Deterministic parameter init (synthetic; mirrors nn.Linear shapes)."""
    ks = jax.random.split(key, 8)

    def lin(kw, kb, fan_in, fan_out):
        bound = 1.0 / jnp.sqrt(fan_in)
        w = jax.random.uniform(kw, (fan_in, fan_out), jnp.float32, -bound, bound)
        b = jax.random.uniform(kb, (1, fan_out), jnp.float32, -bound, bound)
        return w, b

    w1, b1 = lin(ks[0], ks[1], in_dim, hidden)
    w2, b2 = lin(ks[2], ks[3], hidden, hidden)
    w3, b3 = lin(ks[4], ks[5], hidden, hidden)
    w4, b4 = lin(ks[6], ks[7], hidden, 1)
    return (w1, b1, w2, b2, w3, b3, w4, b4)


def _reference_forward(x, actions, goals, params, max_action,
                       compute_dtype=jnp.float32):
    """Pure-JAX reference (optionally emulating the bf16 matmul operands)."""
    w1, b1, w2, b2, w3, b3, w4, b4 = params
    cd = jnp.dtype(compute_dtype)
    h = jnp.concatenate([x, goals, actions / max_action], axis=1)

    def dense_relu(h, w, b):
        y = jnp.dot(h.astype(cd), w.astype(cd),
                    preferred_element_type=jnp.float32)
        return jnp.maximum(y + b.reshape(1, -1), 0.0)

    h = dense_relu(h, w1, b1)
    h = dense_relu(h, w2, b2)
    h = dense_relu(h, w3, b3)
    return jnp.dot(h, w4, preferred_element_type=jnp.float32) + b4.reshape(1, 1)


if __name__ == "__main__":
    # small env: obs=10, goal=5, action=4
    OBS, GOAL, ACT = 10, 5, 4
    MAX_ACTION = 1.0
    in_dim = OBS + GOAL + ACT

    key = jax.random.PRNGKey(0)
    kx, kg, ka, kp, kx2, kg2, ka2 = jax.random.split(key, 7)
    params = init_critic_params(kp, in_dim, hidden=64)

    fwd = jax.jit(critic_forward,
                  static_argnames=("max_action", "tile_b", "compute_dtype"))

    # ---- demo 1: small batch, exact f32 path, single tile -------------------
    B1 = 8
    x1 = jax.random.normal(kx, (B1, OBS), jnp.float32)
    g1 = jax.random.normal(kg, (B1, GOAL), jnp.float32)
    a1 = jax.random.uniform(ka, (B1, ACT), jnp.float32, -MAX_ACTION, MAX_ACTION)

    q1 = jax.block_until_ready(
        fwd(x1, a1, g1, params, max_action=MAX_ACTION,
            compute_dtype=jnp.float32))
    q1_ref = _reference_forward(x1, a1, g1, params, MAX_ACTION)
    assert q1.shape == (B1, 1)
    assert jnp.allclose(q1, q1_ref, atol=1e-4, rtol=1e-4), \
        float(jnp.max(jnp.abs(q1 - q1_ref)))

    # ---- demo 2: larger batch -> 2-step parallel grid, default bf16 operands -
    B2 = 300
    x2 = jax.random.normal(kx2, (B2, OBS), jnp.float32)
    g2 = jax.random.normal(kg2, (B2, GOAL), jnp.float32)
    a2 = jax.random.uniform(ka2, (B2, ACT), jnp.float32, -MAX_ACTION, MAX_ACTION)

    q2 = jax.block_until_ready(fwd(x2, a2, g2, params, max_action=MAX_ACTION))
    q2_ref = _reference_forward(x2, a2, g2, params, MAX_ACTION,
                                compute_dtype=jnp.bfloat16)
    assert q2.shape == (B2, 1)
    assert jnp.allclose(q2, q2_ref, atol=2e-3, rtol=2e-3), \
        float(jnp.max(jnp.abs(q2 - q2_ref)))

    print("KERNEL_OK")
</pallas_src>

<mosaic_0001>
module attributes {stable_mosaic.version = 11 : i64} {
  func.func @_critic_kernel(%arg0: i32, %arg1: memref<8x19xf32, #tpu.memory_space<vmem>>, %arg2: memref<19x64xf32, #tpu.memory_space<vmem>>, %arg3: memref<64x64xf32, #tpu.memory_space<vmem>>, %arg4: memref<64x64xf32, #tpu.memory_space<vmem>>, %arg5: memref<4x64xf32, #tpu.memory_space<vmem>>, %arg6: memref<1xf32, #tpu.memory_space<smem>>, %arg7: memref<1x8xf32, #tpu.memory_space<vmem>>) attributes {dimension_semantics = [#tpu.dimension_semantics<parallel>], iteration_bounds = array<i64: 1>, scalar_prefetch = 0 : i64, scratch_operands = 0 : i64, tpu.core_type = #tpu.core_type<tc>, window_params = [{transform_indices = @transform_0, window_bounds = array<i64: 8, 19>}, {pipeline_mode = #tpu.pipeline_mode<synchronous>, transform_indices = @transform_1, window_bounds = array<i64: 19, 64>}, {pipeline_mode = #tpu.pipeline_mode<synchronous>, transform_indices = @transform_2, window_bounds = array<i64: 64, 64>}, {pipeline_mode = #tpu.pipeline_mode<synchronous>, transform_indices = @transform_3, window_bounds = array<i64: 64, 64>}, {pipeline_mode = #tpu.pipeline_mode<synchronous>, transform_indices = @transform_4, window_bounds = array<i64: 4, 64>}, {transform_indices = @transform_5, window_bounds = array<i64: 1>}, {transform_indices = @transform_6, window_bounds = array<i64: 1, 8>}]} {
    %c0 = arith.constant 0 : index
    %c0_0 = arith.constant 0 : index
    %0 = vector.load %arg5[%c0, %c0_0] : memref<4x64xf32, #tpu.memory_space<vmem>>, vector<1x64xf32>
    %c1 = arith.constant 1 : index
    %c0_1 = arith.constant 0 : index
    %1 = vector.load %arg5[%c1, %c0_1] : memref<4x64xf32, #tpu.memory_space<vmem>>, vector<1x64xf32>
    %c2 = arith.constant 2 : index
    %c0_2 = arith.constant 0 : index
    %2 = vector.load %arg5[%c2, %c0_2] : memref<4x64xf32, #tpu.memory_space<vmem>>, vector<1x64xf32>
    %c3 = arith.constant 3 : index
    %c0_3 = arith.constant 0 : index
    %3 = vector.load %arg5[%c3, %c0_3] : memref<4x64xf32, #tpu.memory_space<vmem>>, vector<1x64xf32>
    %c0_4 = arith.constant 0 : index
    %c0_5 = arith.constant 0 : index
    %4 = vector.load %arg1[%c0_4, %c0_5] : memref<8x19xf32, #tpu.memory_space<vmem>>, vector<8x19xf32>
    %c0_6 = arith.constant 0 : index
    %c0_7 = arith.constant 0 : index
    %5 = vector.load %arg2[%c0_6, %c0_7] : memref<19x64xf32, #tpu.memory_space<vmem>>, vector<19x64xf32>
    %cst = arith.constant dense<0.000000e+00> : vector<8x64xf32>
    %6 = tpu.matmul %4, %5, %cst {dimension_numbers = #tpu.dot_dimension_numbers<[1], [0], [0], [1], [0, 0, 1, 1], [], []>} : vector<8x19xf32>, vector<19x64xf32>, vector<8x64xf32> -> vector<8x64xf32>
    %7 = vector.broadcast %0 : vector<1x64xf32> to vector<8x64xf32>
    %8 = arith.addf %6, %7 : vector<8x64xf32>
    %cst_8 = arith.constant 0.000000e+00 : f32
    %9 = vector.broadcast %cst_8 : f32 to vector<8x64xf32>
    %10 = arith.maximumf %8, %9 : vector<8x64xf32>
    %c0_9 = arith.constant 0 : index
    %c0_10 = arith.constant 0 : index
    %11 = vector.load %arg3[%c0_9, %c0_10] : memref<64x64xf32, #tpu.memory_space<vmem>>, vector<64x64xf32>
    %cst_11 = arith.constant dense<0.000000e+00> : vector<8x64xf32>
    %12 = tpu.matmul %10, %11, %cst_11 {dimension_numbers = #tpu.dot_dimension_numbers<[1], [0], [0], [1], [0, 0, 1, 1], [], []>} : vector<8x64xf32>, vector<64x64xf32>, vector<8x64xf32> -> vector<8x64xf32>
    %13 = vector.broadcast %1 : vector<1x64xf32> to vector<8x64xf32>
    %14 = arith.addf %12, %13 : vector<8x64xf32>
    %cst_12 = arith.constant 0.000000e+00 : f32
    %15 = vector.broadcast %cst_12 : f32 to vector<8x64xf32>
    %16 = arith.maximumf %14, %15 : vector<8x64xf32>
    %c0_13 = arith.constant 0 : index
    %c0_14 = arith.constant 0 : index
    %17 = vector.load %arg4[%c0_13, %c0_14] : memref<64x64xf32, #tpu.memory_space<vmem>>, vector<64x64xf32>
    %cst_15 = arith.constant dense<0.000000e+00> : vector<8x64xf32>
    %18 = tpu.matmul %16, %17, %cst_15 {dimension_numbers = #tpu.dot_dimension_numbers<[1], [0], [0], [1], [0, 0, 1, 1], [], []>} : vector<8x64xf32>, vector<64x64xf32>, vector<8x64xf32> -> vector<8x64xf32>
    %19 = vector.broadcast %2 : vector<1x64xf32> to vector<8x64xf32>
    %20 = arith.addf %18, %19 : vector<8x64xf32>
    %cst_16 = arith.constant 0.000000e+00 : f32
    %21 = vector.broadcast %cst_16 : f32 to vector<8x64xf32>
    %22 = arith.maximumf %20, %21 : vector<8x64xf32>
    %cst_17 = arith.constant dense<0.000000e+00> : vector<1x8xf32>
    %23 = tpu.matmul %3, %22, %cst_17 {dimension_numbers = #tpu.dot_dimension_numbers<[1], [1], [0], [0], [0, 0, 1, 0], [], []>} : vector<1x64xf32>, vector<8x64xf32>, vector<1x8xf32> -> vector<1x8xf32>
    %c0_18 = arith.constant 0 : index
    %24 = memref.load %arg6[%c0_18] : memref<1xf32, #tpu.memory_space<smem>>
    %25 = vector.broadcast %24 : f32 to vector<1x8xf32>
    %26 = arith.addf %23, %25 : vector<1x8xf32>
    %c0_19 = arith.constant 0 : index
    %c0_20 = arith.constant 0 : index
    %27 = vector.load %arg7[%c0_19, %c0_20] : memref<1x8xf32, #tpu.memory_space<vmem>>, vector<1x8xf32>
    tpu.vector_store %arg7[%c0_19, %c0_20], %26 {strides = array<i32>} : memref<1x8xf32, #tpu.memory_space<vmem>>, vector<1x8xf32>,
    return
  }
  func.func @transform_0(%arg0: i32) -> (i32, i32) {
    %c0_i32 = arith.constant 0 : i32
    %c0_i32_0 = arith.constant 0 : i32
    return %arg0, %c0_i32 : i32, i32
  }
  func.func @transform_1(%arg0: i32) -> (i32, i32) {
    %c0_i32 = arith.constant 0 : i32
    %c0_i32_0 = arith.constant 0 : i32
    %c0_i32_1 = arith.constant 0 : i32
    return %c0_i32, %c0_i32_0 : i32, i32
  }
  func.func @transform_2(%arg0: i32) -> (i32, i32) {
    %c0_i32 = arith.constant 0 : i32
    %c0_i32_0 = arith.constant 0 : i32
    %c0_i32_1 = arith.constant 0 : i32
    return %c0_i32, %c0_i32_0 : i32, i32
  }
  func.func @transform_3(%arg0: i32) -> (i32, i32) {
    %c0_i32 = arith.constant 0 : i32
    %c0_i32_0 = arith.constant 0 : i32
    %c0_i32_1 = arith.constant 0 : i32
    return %c0_i32, %c0_i32_0 : i32, i32
  }
  func.func @transform_4(%arg0: i32) -> (i32, i32) {
    %c0_i32 = arith.constant 0 : i32
    %c0_i32_0 = arith.constant 0 : i32
    %c0_i32_1 = arith.constant 0 : i32
    return %c0_i32, %c0_i32_0 : i32, i32
  }
  func.func @transform_5(%arg0: i32) -> i32 {
    %c0_i32 = arith.constant 0 : i32
    %c0_i32_0 = arith.constant 0 : i32
    return %c0_i32 : i32
  }
  func.func @transform_6(%arg0: i32) -> (i32, i32) {
    %c0_i32 = arith.constant 0 : i32
    %c0_i32_0 = arith.constant 0 : i32
    return %c0_i32, %arg0 : i32, i32
  }
}

</mosaic_0001>

<llo_original>
// kernel: critic_forward.1
$region0: #{critic_forward.1}
  #allocation0 [shape = 'u32[]', space=smem, size = 0x4, offset = 0x4, fixed_abs, tag = 'smem constant byte address 0x4 - core index']
  #allocation1 [shape = 'u32[144,128]{1,0:T(1,128)}', space=vmem, size = 0x12000, scoped, tag = 'internal scratch']
  #allocation2 [shape = 'f32[1]{0:T(128)S(6)}', space=smem, size = 0x200, scoped, tag = 'scoped memory for critic_forward.1']
  %s0 = inlined_call_operand.vmem [shape: f32[8,19], index: 0, kind: input, shape index: {}]
  %s1 = inlined_call_operand.vmem [shape: f32[19,64], index: 1, kind: input, shape index: {}]
  %s2 = inlined_call_operand.vmem [shape: f32[64,64], index: 2, kind: input, shape index: {}]
  %s3 = inlined_call_operand.vmem [shape: f32[64,64], index: 3, kind: input, shape index: {}]
  %s4 = inlined_call_operand.vmem [shape: f32[4,64], index: 4, kind: input, shape index: {}]
  %s5 = inlined_call_operand.<no memory space> [shape: f32[1], index: 5, kind: input, shape index: {}]
  %s6 = inlined_call_operand.hbm [shape: f32[1,8], index: 6, kind: output, shape index: {}]
  %s7 = sld [smem:[#allocation0]]
  $region34: #{critic_forward.1} parent=0
    _
  %s9 = ssub.s32 1, %s7
  %s10 = scalar_select 0, %s9, %s7
  %11 = sst [smem:[#allocation2]] %s5
  $region1: #{critic_forward.1} parent=0
    #allocation3 [shape = 'u8[512]{0}', space=vmem, size = 0x400, scoped, tag = 'output window, operand 0, single buffered']
    #allocation4 [shape = 's32[1]{0}', space=sflag, size = 0x4, scoped, tag = 'scoped memory for critic_forward.1']
    %12 = vsyncpa [#allocation4], 0
    // Predicated region
    $region2: #{critic_forward.1} parent=1 // pred_check
      _
    $region3: #{critic_forward.1} parent=1 // pred_check_branch
      %14 = sbr.rel (0) target = $region5
    $region4: #{critic_forward.1} parent=1 // pred_region
      _
    $region5: #{critic_forward.1} parent=1 // pred_fallthru
      _
    // Predicated region
    $region6: #{critic_forward.1} parent=1 // pred_check
      _
    $region7: #{critic_forward.1} parent=1 // pred_check_branch
      %16 = sbr.rel (0) target = $region9
    $region8: #{critic_forward.1} parent=1 // pred_region
      _
    $region9: #{critic_forward.1} parent=1 // pred_fallthru
      _
    // Predicated region
    $region10: #{critic_forward.1} parent=1 // pred_check
      _
    $region11: #{critic_forward.1} parent=1 // pred_check_branch
      %18 = sbr.rel (0) target = $region13
    $region12: #{critic_forward.1} parent=1 // pred_region
      _
    $region13: #{critic_forward.1} parent=1 // pred_fallthru
      _
    // Predicated region
    $region14: #{critic_forward.1} parent=1 // pred_check
      _
    $region15: #{critic_forward.1} parent=1 // pred_check_branch
      %20 = sbr.rel (0) target = $region17
    $region16: #{critic_forward.1} parent=1 // pred_region
      _
    $region17: #{critic_forward.1} parent=1 // pred_fallthru
      _
    // Predicated region
    $region18: #{critic_forward.1} parent=1 // pred_check
      _
    $region19: #{critic_forward.1} parent=1 // pred_check_branch
      %22 = sbr.rel (0) target = $region21
    $region20: #{critic_forward.1} parent=1 // pred_region
      _
    $region21: #{critic_forward.1} parent=1 // pred_fallthru
      _
    // Predicated region
    $region22: #{critic_forward.1} parent=1 // pred_check
      _
    $region23: #{critic_forward.1} parent=1 // pred_check_branch
      %24 = sbr.rel (0) target = $region25
    $region24: #{critic_forward.1} parent=1 // pred_region
      _
    $region25: #{critic_forward.1} parent=1 // pred_fallthru
      _
    %v25 = vld [vmem:[%s4] sm:$0x1]
    %v26 = vld [vmem:[%s4 + $0x1] sm:$0x1]
    %v27 = vld [vmem:[%s4 + $0x2] sm:$0x1]
    %v28 = vld [vmem:[%s4 + $0x3] sm:$0x1]
    %v29 = vld [vmem:[%s0] sm:$0xff]
    %v30 = vld [vmem:[%s1] sm:$0xff]
    %v31 = vld [vmem:[%s1 + $0x8] sm:$0xff]
    %v32 = vld [vmem:[%s1 + $0x10] sm:$0x7]
    %v33 = vlaneseq
    %v34 = vshrl.u32 %v33, 7
    %v35 = vsub.s32 0, %v34
    %v36 = vrot.slane %v25, %v35
    %vm37 = vcmask 154624
    %v39 = vsel %vm37, %v29, 0
    %vm41 = vcmask 1042432
    %v43 = vsel %vm41, %v32, 0
    %45 = vmatprep.subr.mxu0 0.0
    %46 = vmatpush1.msra.mxu0 %v30
    %47 = vmatprep.subr.mxu0 0.0
    %48 = vmatpush1.msra.mxu0 %v31
    %49 = vmatprep.subr.mxu0 0.0
    %50 = vmatpush1.msra.mxu0 %v43
    %51 = vmatprep.subr.mxu0 0.0
    %52 = vmatpush1.msra.mxu0 0.0
    %53 = vmatprep.subr.mxu0 0.0
    %54 = vmatpush1.msra.mxu0 0.0
    %55 = vmatprep.subr.mxu0 0.0
    %56 = vmatpush1.msra.mxu0 0.0
    %57 = vmatprep.subr.mxu0 0.0
    %58 = vmatpush1.msra.mxu0 0.0
    %59 = vmatprep.subr.mxu0 0.0
    %60 = vmatpush1.msra.mxu0 0.0
    %61 = vmatprep.subr.mxu0 0.0
    %62 = vmatpush1.msra.mxu0 0.0
    %63 = vmatprep.subr.mxu0 0.0
    %64 = vmatpush1.msra.mxu0 0.0
    %65 = vmatprep.subr.mxu0 0.0
    %66 = vmatpush1.msra.mxu0 0.0
    %67 = vmatprep.subr.mxu0 0.0
    %68 = vmatpush1.msra.mxu0 0.0
    %69 = vmatprep.subr.mxu0 0.0
    %70 = vmatpush1.msra.mxu0 0.0
    %71 = vmatprep.subr.mxu0 0.0
    %72 = vmatpush1.msra.mxu0 0.0
    %73 = vmatprep.subr.mxu0 0.0
    %74 = vmatpush1.msra.mxu0 0.0
    %75 = vmatprep.subr.mxu0 0.0
    %76 = vmatpush1.msra.mxu0 0.0
    %77 = vmatprep.subr.mxu0 0.0
    %78 = vmatpush1.msra.mxu0 0.0
    %79 = vmatprep.subr.mxu0 0.0
    %80 = vmatpush1.msra.mxu0 0.0
    %81 = vmatprep.subr.mxu0 0.0
    %82 = vmatpush1.msra.mxu0 0.0
    %83 = vmatprep.subr.mxu0 0.0
    %84 = vmatpush1.msra.mxu0 0.0
    %85 = vmatprep.subr.mxu0 0.0
    %86 = vmatpush1.msra.mxu0 0.0
    %87 = vmatprep.subr.mxu0 0.0
    %88 = vmatpush1.msra.mxu0 0.0
    %89 = vmatprep.subr.mxu0 0.0
    %90 = vmatpush1.msra.mxu0 0.0
    %91 = vmatprep.subr.mxu0 0.0
    %92 = vmatpush1.msra.mxu0 0.0
    %93 = vmatprep.subr.mxu0 0.0
    %94 = vmatpush1.msra.mxu0 0.0
    %95 = vmatprep.subr.mxu0 0.0
    %96 = vmatpush1.msra.mxu0 0.0
    %97 = vmatprep.subr.mxu0 0.0
    %98 = vmatpush1.msra.mxu0 0.0
    %99 = vmatprep.subr.mxu0 0.0
    %100 = vmatpush1.msra.mxu0 0.0
    %101 = vmatprep.subr.mxu0 0.0
    %102 = vmatpush1.msra.mxu0 0.0
    %103 = vmatprep.subr.mxu0 0.0
    %104 = vmatpush1.msra.mxu0 0.0
    %105 = vmatprep.subr.mxu0 0.0
    %106 = vmatpush1.msra.mxu0 0.0
    %107 = vmatprep.subr.mxu0 0.0
    %108 = vmatpush1.msra.mxu0 0.0
    %109 = vmatprep.mubr.f32.mxu0 0.0
    %110 = vmatmul.mubr.f32.gmra.mrb[0].mxu0 %v39
    %v111 = vpop.f32.mrb[0].mxu0
    %v112 = vadd.f32 %v36, %v111
    %v113 = vpop.f32.mrb[0].mxu0
    %114 = vdwg.mxu0
    %v115 = vmax.f32 %v112, 0.0
    %v116 = vld [vmem:[%s2] sm:$0xff]
    %v117 = vld [vmem:[%s2 + $0x8] sm:$0xff]
    %v118 = vld [vmem:[%s2 + $0x10] sm:$0xff]
    %v119 = vld [vmem:[%s2 + $0x18] sm:$0xff]
    %v120 = vld [vmem:[%s2 + $0x20] sm:$0xff]
    %v121 = vld [vmem:[%s2 + $0x28] sm:$0xff]
    %v122 = vld [vmem:[%s2 + $0x30] sm:$0xff]
    %v123 = vld [vmem:[%s2 + $0x38] sm:$0xff]
    %v124 = vlaneseq
    %v125 = vshrl.u32 %v124, 7
    %v126 = vsub.s32 0, %v125
    %v127 = vrot.slane %v26, %v126
    %vm128 = vcmask 523264
    %v130 = vsel %vm128, %v115, 0
    %132 = vmatprep.subr.mxu0 0.0
    %133 = vmatpush1.msra.mxu0 %v116
    %134 = vmatprep.subr.mxu0 0.0
    %135 = vmatpush1.msra.mxu0 %v117
    %136 = vmatprep.subr.mxu0 0.0
    %137 = vmatpush1.msra.mxu0 %v118
    %138 = vmatprep.subr.mxu0 0.0
    %139 = vmatpush1.msra.mxu0 %v119
    %140 = vmatprep.subr.mxu0 0.0
    %141 = vmatpush1.msra.mxu0 %v120
    %142 = vmatprep.subr.mxu0 0.0
    %143 = vmatpush1.msra.mxu0 %v121
    %144 = vmatprep.subr.mxu0 0.0
    %145 = vmatpush1.msra.mxu0 %v122
    %146 = vmatprep.subr.mxu0 0.0
    %147 = vmatpush1.msra.mxu0 %v123
    %148 = vmatprep.subr.mxu0 0.0
    %149 = vmatpush1.msra.mxu0 0.0
    %150 = vmatprep.subr.mxu0 0.0
    %151 = vmatpush1.msra.mxu0 0.0
    %152 = vmatprep.subr.mxu0 0.0
    %153 = vmatpush1.msra.mxu0 0.0
    %154 = vmatprep.subr.mxu0 0.0
    %155 = vmatpush1.msra.mxu0 0.0
    %156 = vmatprep.subr.mxu0 0.0
    %157 = vmatpush1.msra.mxu0 0.0
    %158 = vmatprep.subr.mxu0 0.0
    %159 = vmatpush1.msra.mxu0 0.0
    %160 = vmatprep.subr.mxu0 0.0
    %161 = vmatpush1.msra.mxu0 0.0
    %162 = vmatprep.subr.mxu0 0.0
    %163 = vmatpush1.msra.mxu0 0.0
    %164 = vmatprep.subr.mxu0 0.0
    %165 = vmatpush1.msra.mxu0 0.0
    %166 = vmatprep.subr.mxu0 0.0
    %167 = vmatpush1.msra.mxu0 0.0
    %168 = vmatprep.subr.mxu0 0.0
    %169 = vmatpush1.msra.mxu0 0.0
    %170 = vmatprep.subr.mxu0 0.0
    %171 = vmatpush1.msra.mxu0 0.0
    %172 = vmatprep.subr.mxu0 0.0
    %173 = vmatpush1.msra.mxu0 0.0
    %174 = vmatprep.subr.mxu0 0.0
    %175 = vmatpush1.msra.mxu0 0.0
    %176 = vmatprep.subr.mxu0 0.0
    %177 = vmatpush1.msra.mxu0 0.0
    %178 = vmatprep.subr.mxu0 0.0
    %179 = vmatpush1.msra.mxu0 0.0
    %180 = vmatprep.subr.mxu0 0.0
    %181 = vmatpush1.msra.mxu0 0.0
    %182 = vmatprep.subr.mxu0 0.0
    %183 = vmatpush1.msra.mxu0 0.0
    %184 = vmatprep.subr.mxu0 0.0
    %185 = vmatpush1.msra.mxu0 0.0
    %186 = vmatprep.subr.mxu0 0.0
    %187 = vmatpush1.msra.mxu0 0.0
    %188 = vmatprep.subr.mxu0 0.0
    %189 = vmatpush1.msra.mxu0 0.0
    %190 = vmatprep.subr.mxu0 0.0
    %191 = vmatpush1.msra.mxu0 0.0
    %192 = vmatprep.subr.mxu0 0.0
    %193 = vmatpush1.msra.mxu0 0.0
    %194 = vmatprep.subr.mxu0 0.0
    %195 = vmatpush1.msra.mxu0 0.0
    %196 = vmatprep.mubr.f32.mxu0 0.0
    %197 = vmatmul.mubr.f32.gmra.mrb[0].mxu0 %v130
    %v198 = vpop.f32.mrb[0].mxu0
    %v199 = vadd.f32 %v127, %v198
    %v200 = vpop.f32.mrb[0].mxu0
    %201 = vdwg.mxu0
    %v202 = vmax.f32 %v199, 0.0
    %v203 = vld [vmem:[%s3] sm:$0xff]
    %v204 = vld [vmem:[%s3 + $0x8] sm:$0xff]
    %v205 = vld [vmem:[%s3 + $0x10] sm:$0xff]
    %v206 = vld [vmem:[%s3 + $0x18] sm:$0xff]
    %v207 = vld [vmem:[%s3 + $0x20] sm:$0xff]
    %v208 = vld [vmem:[%s3 + $0x28] sm:$0xff]
    %v209 = vld [vmem:[%s3 + $0x30] sm:$0xff]
    %v210 = vld [vmem:[%s3 + $0x38] sm:$0xff]
    %v211 = vlaneseq
    %v212 = vshrl.u32 %v211, 7
    %v213 = vsub.s32 0, %v212
    %v214 = vrot.slane %v27, %v213
    %v216 = vsel %vm128, %v202, 0
    %218 = vmatprep.subr.mxu0 0.0
    %219 = vmatpush1.msra.mxu0 %v203
    %220 = vmatprep.subr.mxu0 0.0
    %221 = vmatpush1.msra.mxu0 %v204
    %222 = vmatprep.subr.mxu0 0.0
    %223 = vmatpush1.msra.mxu0 %v205
    %224 = vmatprep.subr.mxu0 0.0
    %225 = vmatpush1.msra.mxu0 %v206
    %226 = vmatprep.subr.mxu0 0.0
    %227 = vmatpush1.msra.mxu0 %v207
    %228 = vmatprep.subr.mxu0 0.0
    %229 = vmatpush1.msra.mxu0 %v208
    %230 = vmatprep.subr.mxu0 0.0
    %231 = vmatpush1.msra.mxu0 %v209
    %232 = vmatprep.subr.mxu0 0.0
    %233 = vmatpush1.msra.mxu0 %v210
    %234 = vmatprep.subr.mxu0 0.0
    %235 = vmatpush1.msra.mxu0 0.0
    %236 = vmatprep.subr.mxu0 0.0
    %237 = vmatpush1.msra.mxu0 0.0
    %238 = vmatprep.subr.mxu0 0.0
    %239 = vmatpush1.msra.mxu0 0.0
    %240 = vmatprep.subr.mxu0 0.0
    %241 = vmatpush1.msra.mxu0 0.0
    %242 = vmatprep.subr.mxu0 0.0
    %243 = vmatpush1.msra.mxu0 0.0
    %244 = vmatprep.subr.mxu0 0.0
    %245 = vmatpush1.msra.mxu0 0.0
    %246 = vmatprep.subr.mxu0 0.0
    %247 = vmatpush1.msra.mxu0 0.0
    %248 = vmatprep.subr.mxu0 0.0
    %249 = vmatpush1.msra.mxu0 0.0
    %250 = vmatprep.subr.mxu0 0.0
    %251 = vmatpush1.msra.mxu0 0.0
    %252 = vmatprep.subr.mxu0 0.0
    %253 = vmatpush1.msra.mxu0 0.0
    %254 = vmatprep.subr.mxu0 0.0
    %255 = vmatpush1.msra.mxu0 0.0
    %256 = vmatprep.subr.mxu0 0.0
    %257 = vmatpush1.msra.mxu0 0.0
    %258 = vmatprep.subr.mxu0 0.0
    %259 = vmatpush1.msra.mxu0 0.0
    %260 = vmatprep.subr.mxu0 0.0
    %261 = vmatpush1.msra.mxu0 0.0
    %262 = vmatprep.subr.mxu0 0.0
    %263 = vmatpush1.msra.mxu0 0.0
    %264 = vmatprep.subr.mxu0 0.0
    %265 = vmatpush1.msra.mxu0 0.0
    %266 = vmatprep.subr.mxu0 0.0
    %267 = vmatpush1.msra.mxu0 0.0
    %268 = vmatprep.subr.mxu0 0.0
    %269 = vmatpush1.msra.mxu0 0.0
    %270 = vmatprep.subr.mxu0 0.0
    %271 = vmatpush1.msra.mxu0 0.0
    %272 = vmatprep.subr.mxu0 0.0
    %273 = vmatpush1.msra.mxu0 0.0
    %274 = vmatprep.subr.mxu0 0.0
    %275 = vmatpush1.msra.mxu0 0.0
    %276 = vmatprep.subr.mxu0 0.0
    %277 = vmatpush1.msra.mxu0 0.0
    %278 = vmatprep.subr.mxu0 0.0
    %279 = vmatpush1.msra.mxu0 0.0
    %280 = vmatprep.subr.mxu0 0.0
    %281 = vmatpush1.msra.mxu0 0.0
    %282 = vmatprep.mubr.f32.mxu0 0.0
    %283 = vmatmul.mubr.f32.gmra.mrb[0].mxu0 %v216
    %v284 = vpop.f32.mrb[0].mxu0
    %v285 = vadd.f32 %v214, %v284
    %v286 = vpop.f32.mrb[0].mxu0
    %287 = vdwg.mxu0
    %v288 = vmax.f32 %v285, 0.0
    %s289 = sld [smem:[#allocation2]]
    %v290 = vstv %s289
    %v292 = vsel %vm128, %v28, 0
    %v295 = vsel %vm128, %v288, 0
    %297 = vmatprep.subr.mxu0 0.0
    %298 = vmatpush1.xpose.msra.mxu0 %v295
    %299 = vmatprep.subr.mxu0 0.0
    %300 = vmatpush1.xpose.msra.mxu0 0.0
    %301 = vmatprep.subr.mxu0 0.0
    %302 = vmatpush1.xpose.msra.mxu0 0.0
    %303 = vmatprep.subr.mxu0 0.0
    %304 = vmatpush1.xpose.msra.mxu0 0.0
    %305 = vmatprep.subr.mxu0 0.0
    %306 = vmatpush1.xpose.msra.mxu0 0.0
    %307 = vmatprep.subr.mxu0 0.0
    %308 = vmatpush1.xpose.msra.mxu0 0.0
    %309 = vmatprep.subr.mxu0 0.0
    %310 = vmatpush1.xpose.msra.mxu0 0.0
    %311 = vmatprep.subr.mxu0 0.0
    %312 = vmatpush1.xpose.msra.mxu0 0.0
    %313 = vmatprep.subr.mxu0 0.0
    %314 = vmatpush1.xpose.msra.mxu0 0.0
    %315 = vmatprep.subr.mxu0 0.0
    %316 = vmatpush1.xpose.msra.mxu0 0.0
    %317 = vmatprep.subr.mxu0 0.0
    %318 = vmatpush1.xpose.msra.mxu0 0.0
    %319 = vmatprep.subr.mxu0 0.0
    %320 = vmatpush1.xpose.msra.mxu0 0.0
    %321 = vmatprep.subr.mxu0 0.0
    %322 = vmatpush1.xpose.msra.mxu0 0.0
    %323 = vmatprep.subr.mxu0 0.0
    %324 = vmatpush1.xpose.msra.mxu0 0.0
    %325 = vmatprep.subr.mxu0 0.0
    %326 = vmatpush1.xpose.msra.mxu0 0.0
    %327 = vmatprep.subr.mxu0 0.0
    %328 = vmatpush1.xpose.msra.mxu0 0.0
    %329 = vmatprep.subr.mxu0 0.0
    %330 = vmatpush1.xpose.msra.mxu0 0.0
    %331 = vmatprep.subr.mxu0 0.0
    %332 = vmatpush1.xpose.msra.mxu0 0.0
    %333 = vmatprep.subr.mxu0 0.0
    %334 = vmatpush1.xpose.msra.mxu0 0.0
    %335 = vmatprep.subr.mxu0 0.0
    %336 = vmatpush1.xpose.msra.mxu0 0.0
    %337 = vmatprep.subr.mxu0 0.0
    %338 = vmatpush1.xpose.msra.mxu0 0.0
    %339 = vmatprep.subr.mxu0 0.0
    %340 = vmatpush1.xpose.msra.mxu0 0.0
    %341 = vmatprep.subr.mxu0 0.0
    %342 = vmatpush1.xpose.msra.mxu0 0.0
    %343 = vmatprep.subr.mxu0 0.0
    %344 = vmatpush1.xpose.msra.mxu0 0.0
    %345 = vmatprep.subr.mxu0 0.0
    %346 = vmatpush1.xpose.msra.mxu0 0.0
    %347 = vmatprep.subr.mxu0 0.0
    %348 = vmatpush1.xpose.msra.mxu0 0.0
    %349 = vmatprep.subr.mxu0 0.0
    %350 = vmatpush1.xpose.msra.mxu0 0.0
    %351 = vmatprep.subr.mxu0 0.0
    %352 = vmatpush1.xpose.msra.mxu0 0.0
    %353 = vmatprep.subr.mxu0 0.0
    %354 = vmatpush1.xpose.msra.mxu0 0.0
    %355 = vmatprep.subr.mxu0 0.0
    %356 = vmatpush1.xpose.msra.mxu0 0.0
    %357 = vmatprep.subr.mxu0 0.0
    %358 = vmatpush1.xpose.msra.mxu0 0.0
    %359 = vmatprep.subr.mxu0 0.0
    %360 = vmatpush1.xpose.msra.mxu0 0.0
    %361 = vmatprep.mubr.f32.mxu0 0.0
    %362 = vmatmul.mubr.f32.gmra.mrb[0].mxu0 %v292
    %v363 = vpop.f32.mrb[0].mxu0
    %v364 = vadd.f32 %v290, %v363
    %v365 = vpop.f32.mrb[0].mxu0
    %366 = vdwg.mxu0
    %vm367 = vcmask 57344
    %368 = vst.msk [vmem:[#allocation3] sm:$0x1] %vm367, %v364
    // Predicated region
    $region26: #{critic_forward.1} parent=1 // pred_check
      _
    $region27: #{critic_forward.1} parent=1 // pred_check_branch
      %370 = sbr.rel (0) target = $region29
    $region28: #{critic_forward.1} parent=1 // pred_region
      %s372 = ssub.s32 16, 16
      %373 = vsyncadd [#allocation4], %s372
      %s375 = sshll.u32 [#allocation3], 4
      %s376 = int_to_ptr.vmem [resolvable:$true] %s375
      %378 = dma.vmem_to_hbm [thread:$0]  %s376, 16, %s6, [#allocation4]
    $region29: #{critic_forward.1} parent=1 // pred_fallthru
      _
    // Predicated region
    $region30: #{critic_forward.1} parent=1 // pred_check
      _
    $region31: #{critic_forward.1} parent=1 // pred_check_branch
      %380 = sbr.rel (0) target = $region33
    $region32: #{critic_forward.1} parent=1 // pred_region
      %381 = dma.done [#allocation4], 16
    $region33: #{critic_forward.1} parent=1 // pred_fallthru
      _
    %382 = vsyncpa [#allocation4], 1

</llo_original>
